<compile_context>
chip_gen: v7x
topology: tpu7x:2x2x1
jax: 0.10.0
libtpu: 0.0.40
codegen_flags: <defaults>
</compile_context>

<pallas_src>
import jax
import jax.numpy as jnp
from jax.experimental import pallas as pl
from jax.experimental.pallas import tpu as pltpu

EPS = 1e-5  # PyTorch nn.LayerNorm default


def _layernorm_rows_f32(x_tile, gamma, beta):
    """Row-wise LayerNorm in f32 (biased variance, eps inside rsqrt)."""
    x = x_tile.astype(jnp.float32)
    mean = jnp.mean(x, axis=-1, keepdims=True)
    centered = x - mean
    var = jnp.mean(centered * centered, axis=-1, keepdims=True)
    return (centered * jax.lax.rsqrt(var + EPS)) * gamma + beta


# ----------------------------------------------------------------------------
# Kernel A: W fully VMEM-resident (1-D grid over row tiles).
# ----------------------------------------------------------------------------
def prenorm_linear_kernel_resident(x_ref, gamma_ref, beta_ref, w_ref, b_ref,
                                   o_ref):
    # x_ref: (TM, dim), gamma/beta: (1, dim) f32, w_ref: (dim, dim_out),
    # b_ref: (1, dim_out) f32, o_ref: (TM, dim_out)
    normed = _layernorm_rows_f32(x_ref[...], gamma_ref[...], beta_ref[...])
    y = jnp.dot(normed.astype(w_ref.dtype), w_ref[...],
                preferred_element_type=jnp.float32)
    o_ref[...] = (y + b_ref[...]).astype(o_ref.dtype)


# ----------------------------------------------------------------------------
# Kernel B: W tiled along dim_out (2-D grid: rows outer, N inner).
# LayerNorm is computed once per row tile (at j == 0), fed directly to the
# j==0 matmul, and cached in VMEM scratch for all later N tiles.
# ----------------------------------------------------------------------------
def prenorm_linear_kernel_tiled(x_ref, gamma_ref, beta_ref, w_ref, b_ref,
                                o_ref, normed_ref):
    j = pl.program_id(1)

    def _matmul_store(normed):
        y = jnp.dot(normed, w_ref[...], preferred_element_type=jnp.float32)
        o_ref[...] = (y + b_ref[...]).astype(o_ref.dtype)

    @pl.when(j == 0)
    def _():
        normed = _layernorm_rows_f32(
            x_ref[...], gamma_ref[...], beta_ref[...]).astype(normed_ref.dtype)
        normed_ref[...] = normed      # cache for j > 0
        _matmul_store(normed)         # use the local value; no reload

    @pl.when(j != 0)
    def _():
        _matmul_store(normed_ref[...])


# ----------------------------------------------------------------------------
# Generation-aware configuration.
# ----------------------------------------------------------------------------
def _detect_tpu():
    kind = ""
    try:
        kind = jax.devices()[0].device_kind.lower()
    except Exception:
        pass
    vmem_cap = None
    try:
        vmem_cap = int(pltpu.get_tpu_info().vmem_capacity_bytes)
    except Exception:
        pass
    return kind, vmem_cap


def _round_tm(tm, rows):
    tm = min(tm, rows)
    if tm < rows:
        tm = max(8, (tm // 8) * 8)
    return tm


def _round_tn(tn, dim_out):
    tn = min(tn, dim_out)
    if tn < dim_out:
        tn = max(128, (tn // 128) * 128)
    return tn


def _select_config(rows, dim, dim_out, x_itemsize, w_itemsize, out_itemsize,
                   tm_override=None, tn_override=None):
    kind, vmem_cap = _detect_tpu()
    if vmem_cap is None:
        # Physical VMEM per TensorCore: v5e/v6e = 128 MiB, v7x = 64 MiB.
        vmem_cap = (64 << 20) if "7" in kind else (128 << 20)

    # Scoped-VMEM request: ~80% of physical, capped at 96 MiB; leaves headroom
    # for compiler-internal scratch / semaphores on every generation.
    vmem_limit = max(32 << 20, min(int(vmem_cap * 0.80), 96 << 20))
    tile_budget = int(vmem_limit * 0.80)

    # Arithmetic intensity w.r.t. W bytes is exactly TM FLOP/byte.
    if "v5" in kind:
        tm_target = 256      # v5e ridge ~240 FLOP/B
    elif "v6" in kind:
        tm_target = 1024     # v6e ridge ~680 FLOP/B -> deep W reuse
    elif "7" in kind:
        tm_target = 384      # v7x: 64 MiB VMEM, ridge ~311 FLOP/B
    else:
        tm_target = 512 if vmem_cap >= (96 << 20) else 256

    if tm_override is not None:
        tm_target = int(tm_override)

    def fits_resident(tm):
        return (2 * tm * dim * x_itemsize           # x double-buffer
                + 2 * dim * dim_out * w_itemsize    # resident W (counted x2)
                + 2 * tm * dim_out * out_itemsize   # out double-buffer
                + 4 * dim * 4 + 2 * dim_out * 4) <= tile_budget

    def fits_tiled(tm, tn):
        return (2 * tm * dim * x_itemsize
                + 2 * dim * tn * w_itemsize
                + 2 * tm * tn * out_itemsize
                + tm * dim * w_itemsize             # normed_ref scratch
                + 4 * dim * 4 + 2 * tn * 4) <= tile_budget

    force_tiled = tn_override is not None and int(tn_override) < dim_out
    resident_ok = (not force_tiled
                   and dim * dim_out * w_itemsize <= min(8 << 20,
                                                         tile_budget // 4))

    if resident_ok:
        tm = _round_tm(tm_target, rows)
        while tm > 8 and not fits_resident(tm):
            tm = _round_tm(max(8, tm // 2), rows)
        if fits_resident(tm):
            return dict(resident=True, tm=tm, tn=dim_out,
                        vmem_limit=vmem_limit)

    # Tiled-N path. Shrink TN before TM (shrinking TM costs more W streaming).
    tm = _round_tm(tm_target, rows)
    tn = _round_tn(int(tn_override) if tn_override is not None else 512,
                   dim_out)
    while not fits_tiled(tm, tn):
        if tn > 128:
            tn = _round_tn(max(128, tn // 2), dim_out)
        elif tm > 8:
            tm = _round_tm(max(8, tm // 2), rows)
        else:
            break
    return dict(resident=False, tm=tm, tn=tn, vmem_limit=vmem_limit)


# ----------------------------------------------------------------------------
# Wrapper.
# ----------------------------------------------------------------------------
def prenorm_linear(x, gamma, beta, w, b, *, tm=None, tn=None,
                   activation_dtype=jnp.bfloat16):
    """x: (batch, seq, dim) -> fn(LayerNorm(x)), fn = Linear(dim, dim_out)."""
    batch, seq, dim = x.shape
    dim_out = w.shape[1]
    rows = batch * seq
    out_dtype = x.dtype

    # Halve x HBM traffic + VMEM footprint: matmul runs in w.dtype anyway, and
    # LayerNorm statistics are recomputed in f32 inside the kernel.
    x_compute_dtype = (activation_dtype
                       if jnp.dtype(x.dtype).itemsize > 2 else x.dtype)
    x2 = x.reshape(rows, dim).astype(x_compute_dtype)
    gamma2 = gamma.reshape(1, dim).astype(jnp.float32)
    beta2 = beta.reshape(1, dim).astype(jnp.float32)
    b2 = b.reshape(1, dim_out).astype(jnp.float32)

    xb = jnp.dtype(x_compute_dtype).itemsize
    wb = jnp.dtype(w.dtype).itemsize
    ob = jnp.dtype(out_dtype).itemsize

    cfg = _select_config(rows, dim, dim_out, xb, wb, ob,
                         tm_override=tm, tn_override=tn)
    TM, TN, resident = cfg["tm"], cfg["tn"], cfg["resident"]

    n_row_tiles = pl.cdiv(rows, TM)
    w_hbm_passes = 1 if resident else n_row_tiles
    cost = pl.CostEstimate(
        flops=2 * rows * dim * dim_out,
        transcendentals=rows,  # one rsqrt per row
        bytes_accessed=int(rows * dim * xb
                           + w_hbm_passes * dim * dim_out * wb
                           + rows * dim_out * ob
                           + 2 * dim * 4 + dim_out * 4),
    )

    if resident:
        grid_spec = pltpu.PrefetchScalarGridSpec(
            num_scalar_prefetch=0,
            grid=(n_row_tiles,),
            in_specs=[
                pl.BlockSpec((TM, dim), lambda i: (i, 0)),      # x row tile
                pl.BlockSpec((1, dim), lambda i: (0, 0)),       # gamma
                pl.BlockSpec((1, dim), lambda i: (0, 0)),       # beta
                pl.BlockSpec((dim, dim_out), lambda i: (0, 0)), # W (resident)
                pl.BlockSpec((1, dim_out), lambda i: (0, 0)),   # bias
            ],
            out_specs=pl.BlockSpec((TM, dim_out), lambda i: (i, 0)),
        )
        kernel = prenorm_linear_kernel_resident
        dim_sem = ("parallel",)
    else:
        # Invariant: rows axis outer + "parallel", N axis inner + "arbitrary";
        # the normed_ref cache is only valid under this ordering.
        grid_spec = pltpu.PrefetchScalarGridSpec(
            num_scalar_prefetch=0,
            grid=(n_row_tiles, pl.cdiv(dim_out, TN)),
            in_specs=[
                pl.BlockSpec((TM, dim), lambda i, j: (i, 0)),   # x row tile
                pl.BlockSpec((1, dim), lambda i, j: (0, 0)),    # gamma
                pl.BlockSpec((1, dim), lambda i, j: (0, 0)),    # beta
                pl.BlockSpec((dim, TN), lambda i, j: (0, j)),   # W N tile
                pl.BlockSpec((1, TN), lambda i, j: (0, j)),     # bias N tile
            ],
            out_specs=pl.BlockSpec((TM, TN), lambda i, j: (i, j)),
            scratch_shapes=[pltpu.VMEM((TM, dim), w.dtype)],    # LN(x) cache
        )
        kernel = prenorm_linear_kernel_tiled
        dim_sem = ("parallel", "arbitrary")

    out2 = pl.pallas_call(
        kernel,
        out_shape=jax.ShapeDtypeStruct((rows, dim_out), out_dtype),
        grid_spec=grid_spec,
        compiler_params=pltpu.CompilerParams(
            dimension_semantics=dim_sem,
            vmem_limit_bytes=cfg["vmem_limit"],
        ),
        cost_estimate=cost,
    )(x2, gamma2, beta2, w, b2)
    return out2.reshape(batch, seq, dim_out)


def prenorm_linear_ref(x, gamma, beta, w, b, *, activation_dtype=jnp.bfloat16):
    """Pure-JAX reference using the same mixed-precision recipe as the kernel."""
    x_compute_dtype = (activation_dtype
                       if jnp.dtype(x.dtype).itemsize > 2 else x.dtype)
    xf = x.astype(x_compute_dtype).astype(jnp.float32)
    mean = jnp.mean(xf, axis=-1, keepdims=True)
    var = jnp.mean((xf - mean) ** 2, axis=-1, keepdims=True)
    normed = (xf - mean) * jax.lax.rsqrt(var + EPS)
    normed = normed * gamma.astype(jnp.float32) + beta.astype(jnp.float32)
    y = jnp.dot(normed.astype(w.dtype), w, preferred_element_type=jnp.float32)
    y = y + b.astype(jnp.float32)
    return y.astype(x.dtype)


if __name__ == "__main__":
    key = jax.random.PRNGKey(0)
    k_x, k_w, k_b, k_x2, k_w2, k_b2 = jax.random.split(key, 6)

    # --- Test 1: small shape -> resident-W fast path -------------------------
    batch, seq, dim, dim_out = 2, 8, 128, 128
    x = jax.random.normal(k_x, (batch, seq, dim), dtype=jnp.float32)
    gamma = jnp.ones((dim,), jnp.float32)      # PyTorch LayerNorm default init
    beta = jnp.zeros((dim,), jnp.float32)
    w = (jax.random.normal(k_w, (dim, dim_out), dtype=jnp.float32) * 0.05
         ).astype(jnp.bfloat16)
    b = jax.random.normal(k_b, (dim_out,), dtype=jnp.float32) * 0.05

    out = prenorm_linear(x, gamma, beta, w, b)
    jax.block_until_ready(out)
    ref = prenorm_linear_ref(x, gamma, beta, w, b)
    assert out.shape == (batch, seq, dim_out)
    assert jnp.allclose(out.astype(jnp.float32), ref.astype(jnp.float32),
                        atol=2e-2, rtol=2e-2), "mismatch vs reference (resident)"

    # --- Test 2: force the tiled (row-tile x N-tile) path --------------------
    dim2, dim_out2 = 256, 256
    x_b = jax.random.normal(k_x2, (batch, seq, dim2), dtype=jnp.float32)
    gamma_b = 1.0 + 0.1 * jax.random.normal(jax.random.PRNGKey(1), (dim2,),
                                            dtype=jnp.float32)
    beta_b = 0.1 * jax.random.normal(jax.random.PRNGKey(2), (dim2,),
                                     dtype=jnp.float32)
    w_b = (jax.random.normal(k_w2, (dim2, dim_out2), dtype=jnp.float32) * 0.05
           ).astype(jnp.bfloat16)
    b_b = jax.random.normal(k_b2, (dim_out2,), dtype=jnp.float32) * 0.05

    out_b = prenorm_linear(x_b, gamma_b, beta_b, w_b, b_b, tm=8, tn=128)
    jax.block_until_ready(out_b)
    ref_b = prenorm_linear_ref(x_b, gamma_b, beta_b, w_b, b_b)
    assert out_b.shape == (batch, seq, dim_out2)
    assert jnp.allclose(out_b.astype(jnp.float32), ref_b.astype(jnp.float32),
                        atol=2e-2, rtol=2e-2), "mismatch vs reference (tiled)"

    print("KERNEL_OK")
</pallas_src>

<mosaic_0001>
module attributes {stable_mosaic.version = 11 : i64} {
  func.func @prenorm_linear_kernel_resident(%arg0: i32, %arg1: memref<16x128xbf16, #tpu.memory_space<vmem>>, %arg2: memref<1x128xf32, #tpu.memory_space<vmem>>, %arg3: memref<1x128xf32, #tpu.memory_space<vmem>>, %arg4: memref<128x128xbf16, #tpu.memory_space<vmem>>, %arg5: memref<1x128xf32, #tpu.memory_space<vmem>>, %arg6: memref<16x128xf32, #tpu.memory_space<vmem>>) attributes {dimension_semantics = [#tpu.dimension_semantics<parallel>], iteration_bounds = array<i64: 1>, scalar_prefetch = 0 : i64, scratch_operands = 0 : i64, tpu.core_type = #tpu.core_type<tc>, window_params = [{transform_indices = @transform_0, window_bounds = array<i64: 16, 128>}, {pipeline_mode = #tpu.pipeline_mode<synchronous>, transform_indices = @transform_1, window_bounds = array<i64: 1, 128>}, {pipeline_mode = #tpu.pipeline_mode<synchronous>, transform_indices = @transform_2, window_bounds = array<i64: 1, 128>}, {pipeline_mode = #tpu.pipeline_mode<synchronous>, transform_indices = @transform_3, window_bounds = array<i64: 128, 128>}, {pipeline_mode = #tpu.pipeline_mode<synchronous>, transform_indices = @transform_4, window_bounds = array<i64: 1, 128>}, {transform_indices = @transform_5, window_bounds = array<i64: 16, 128>}]} {
    %c0 = arith.constant 0 : index
    %c0_0 = arith.constant 0 : index
    %0 = vector.load %arg1[%c0, %c0_0] : memref<16x128xbf16, #tpu.memory_space<vmem>>, vector<16x128xbf16>
    %c0_1 = arith.constant 0 : index
    %c0_2 = arith.constant 0 : index
    %1 = vector.load %arg2[%c0_1, %c0_2] : memref<1x128xf32, #tpu.memory_space<vmem>>, vector<1x128xf32>
    %c0_3 = arith.constant 0 : index
    %c0_4 = arith.constant 0 : index
    %2 = vector.load %arg3[%c0_3, %c0_4] : memref<1x128xf32, #tpu.memory_space<vmem>>, vector<1x128xf32>
    %3 = arith.extf %0 : vector<16x128xbf16> to vector<16x128xf32>
    %cst = arith.constant dense<0.000000e+00> : vector<16xf32>
    %4 = vector.multi_reduction <add>, %3, %cst [1] : vector<16x128xf32> to vector<16xf32>
    %5 = vector.shape_cast %4 : vector<16xf32> to vector<16x1xf32>
    %cst_5 = arith.constant 1.280000e+02 : f32
    %6 = vector.broadcast %cst_5 : f32 to vector<16x1xf32>
    %7 = arith.divf %5, %6 : vector<16x1xf32>
    %8 = vector.broadcast %7 : vector<16x1xf32> to vector<16x128xf32>
    %9 = arith.subf %3, %8 : vector<16x128xf32>
    %10 = arith.mulf %9, %9 : vector<16x128xf32>
    %cst_6 = arith.constant dense<0.000000e+00> : vector<16xf32>
    %11 = vector.multi_reduction <add>, %10, %cst_6 [1] : vector<16x128xf32> to vector<16xf32>
    %12 = vector.shape_cast %11 : vector<16xf32> to vector<16x1xf32>
    %cst_7 = arith.constant 1.280000e+02 : f32
    %13 = vector.broadcast %cst_7 : f32 to vector<16x1xf32>
    %14 = arith.divf %12, %13 : vector<16x1xf32>
    %cst_8 = arith.constant 9.99999974E-6 : f32
    %15 = vector.broadcast %cst_8 : f32 to vector<16x1xf32>
    %16 = arith.addf %14, %15 : vector<16x1xf32>
    %17 = math.rsqrt %16 : vector<16x1xf32>
    %18 = vector.broadcast %17 : vector<16x1xf32> to vector<16x128xf32>
    %19 = arith.mulf %9, %18 : vector<16x128xf32>
    %20 = vector.broadcast %1 : vector<1x128xf32> to vector<16x128xf32>
    %21 = arith.mulf %19, %20 : vector<16x128xf32>
    %22 = vector.broadcast %2 : vector<1x128xf32> to vector<16x128xf32>
    %23 = arith.addf %21, %22 : vector<16x128xf32>
    %24 = arith.truncf %23 : vector<16x128xf32> to vector<16x128xbf16>
    %c0_9 = arith.constant 0 : index
    %c0_10 = arith.constant 0 : index
    %25 = vector.load %arg4[%c0_9, %c0_10] : memref<128x128xbf16, #tpu.memory_space<vmem>>, vector<128x128xbf16>
    %cst_11 = arith.constant dense<0.000000e+00> : vector<16x128xf32>
    %26 = tpu.matmul %24, %25, %cst_11 {dimension_numbers = #tpu.dot_dimension_numbers<[1], [0], [0], [1], [0, 0, 1, 1], [], []>} : vector<16x128xbf16>, vector<128x128xbf16>, vector<16x128xf32> -> vector<16x128xf32>
    %c0_12 = arith.constant 0 : index
    %c0_13 = arith.constant 0 : index
    %27 = vector.load %arg5[%c0_12, %c0_13] : memref<1x128xf32, #tpu.memory_space<vmem>>, vector<1x128xf32>
    %28 = vector.broadcast %27 : vector<1x128xf32> to vector<16x128xf32>
    %29 = arith.addf %26, %28 : vector<16x128xf32>
    %c0_14 = arith.constant 0 : index
    %c0_15 = arith.constant 0 : index
    %30 = vector.load %arg6[%c0_14, %c0_15] : memref<16x128xf32, #tpu.memory_space<vmem>>, vector<16x128xf32>
    tpu.vector_store %arg6[%c0_14, %c0_15], %29 {strides = array<i32>} : memref<16x128xf32, #tpu.memory_space<vmem>>, vector<16x128xf32>,
    return
  }
  func.func @transform_0(%arg0: i32) -> (i32, i32) {
    %c0_i32 = arith.constant 0 : i32
    %c0_i32_0 = arith.constant 0 : i32
    return %arg0, %c0_i32 : i32, i32
  }
  func.func @transform_1(%arg0: i32) -> (i32, i32) {
    %c0_i32 = arith.constant 0 : i32
    %c0_i32_0 = arith.constant 0 : i32
    %c0_i32_1 = arith.constant 0 : i32
    return %c0_i32, %c0_i32_0 : i32, i32
  }
  func.func @transform_2(%arg0: i32) -> (i32, i32) {
    %c0_i32 = arith.constant 0 : i32
    %c0_i32_0 = arith.constant 0 : i32
    %c0_i32_1 = arith.constant 0 : i32
    return %c0_i32, %c0_i32_0 : i32, i32
  }
  func.func @transform_3(%arg0: i32) -> (i32, i32) {
    %c0_i32 = arith.constant 0 : i32
    %c0_i32_0 = arith.constant 0 : i32
    %c0_i32_1 = arith.constant 0 : i32
    return %c0_i32, %c0_i32_0 : i32, i32
  }
  func.func @transform_4(%arg0: i32) -> (i32, i32) {
    %c0_i32 = arith.constant 0 : i32
    %c0_i32_0 = arith.constant 0 : i32
    %c0_i32_1 = arith.constant 0 : i32
    return %c0_i32, %c0_i32_0 : i32, i32
  }
  func.func @transform_5(%arg0: i32) -> (i32, i32) {
    %c0_i32 = arith.constant 0 : i32
    %c0_i32_0 = arith.constant 0 : i32
    return %arg0, %c0_i32 : i32, i32
  }
}

</mosaic_0001>

<llo_original>
// kernel: tpu_custom_call.1
$region0: #{tpu_custom_call.1}
  #allocation0 [shape = 'u32[]', space=smem, size = 0x4, offset = 0x4, fixed_abs, tag = 'smem constant byte address 0x4 - core index']
  #allocation1 [shape = 'u32[144,128]{1,0:T(1,128)}', space=vmem, size = 0x12000, scoped, tag = 'internal scratch']
  %s0 = inlined_call_operand.hbm [shape: bf16[16,128], index: 0, kind: input, shape index: {}]
  %s1 = inlined_call_operand.hbm [shape: f32[1,128], index: 1, kind: input, shape index: {}]
  %s2 = inlined_call_operand.hbm [shape: f32[1,128], index: 2, kind: input, shape index: {}]
  %s3 = inlined_call_operand.hbm [shape: bf16[128,128], index: 3, kind: input, shape index: {}]
  %s4 = inlined_call_operand.hbm [shape: f32[1,128], index: 4, kind: input, shape index: {}]
  %s5 = inlined_call_operand.hbm [shape: f32[16,128], index: 5, kind: output, shape index: {}]
  %s6 = sld [smem:[#allocation0]]
  $region50: #{tpu_custom_call.1} parent=0
    _
  %s8 = ssub.s32 1, %s6
  %s9 = scalar_select 0, %s8, %s6
  $region1: #{tpu_custom_call.1} parent=0
    #allocation2 [shape = 'u8[4096]{0}', space=vmem, size = 0x1000, scoped, tag = 'input window, operand 0, single buffered']
    #allocation3 [shape = 's32[1]{0}', space=sflag, size = 0x4, scoped, tag = 'scoped memory for tpu_custom_call.1']
    #allocation4 [shape = 's32[1]{0}', space=sflag, size = 0x4, scoped, tag = 'scoped memory for tpu_custom_call.1']
    #allocation5 [shape = 'u8[512]{0}', space=vmem, size = 0x400, scoped, tag = 'input window, operand 1, single buffered']
    #allocation6 [shape = 's32[1]{0}', space=sflag, size = 0x4, scoped, tag = 'scoped memory for tpu_custom_call.1']
    #allocation7 [shape = 'u8[512]{0}', space=vmem, size = 0x400, scoped, tag = 'input window, operand 2, single buffered']
    #allocation8 [shape = 'u8[32768]{0}', space=vmem, size = 0x8000, scoped, tag = 'input window, operand 3, single buffered']
    #allocation9 [shape = 's32[1]{0}', space=sflag, size = 0x4, scoped, tag = 'scoped memory for tpu_custom_call.1']
    #allocation10 [shape = 'u8[512]{0}', space=vmem, size = 0x400, scoped, tag = 'input window, operand 4, single buffered']
    #allocation11 [shape = 'u8[8192]{0}', space=vmem, size = 0x2000, scoped, tag = 'output window, operand 0, single buffered']
    %10 = vsyncpa [#allocation3], 0
    %11 = vsyncpa [#allocation6], 0
    %12 = vsyncpa [#allocation9], 0
    %13 = vsyncpa [#allocation4], 0
    // Predicated region
    $region2: #{tpu_custom_call.1} parent=1 // pred_check
      _
    $region3: #{tpu_custom_call.1} parent=1 // pred_check_branch
      %15 = sbr.rel (0) target = $region5
    $region4: #{tpu_custom_call.1} parent=1 // pred_region
      %s17 = ssub.s32 128, 128
      %18 = vsyncadd [#allocation3], %s17
      %s19 = sshll.u32 [#allocation2], 4
      %s20 = int_to_ptr.vmem [resolvable:$true] %s19
      %25 = dma.hbm_to_vmem [thread:$0]  %s0, 128, %s20, [#allocation3], 64, 64, 4
    $region5: #{tpu_custom_call.1} parent=1 // pred_fallthru
      _
    // Predicated region
    $region6: #{tpu_custom_call.1} parent=1 // pred_check
      _
    $region7: #{tpu_custom_call.1} parent=1 // pred_check_branch
      %27 = sbr.rel (0) target = $region9
    $region8: #{tpu_custom_call.1} parent=1 // pred_region
      %s29 = ssub.s32 16, 16
      %30 = vsyncadd [#allocation6], %s29
      %s32 = sshll.u32 [#allocation5], 4
      %s33 = int_to_ptr.vmem [resolvable:$true] %s32
      %35 = dma.hbm_to_vmem [thread:$0]  %s1, 16, %s33, [#allocation6]
    $region9: #{tpu_custom_call.1} parent=1 // pred_fallthru
      _
    // Predicated region
    $region10: #{tpu_custom_call.1} parent=1 // pred_check
      _
    $region11: #{tpu_custom_call.1} parent=1 // pred_check_branch
      %37 = sbr.rel (0) target = $region13
    $region12: #{tpu_custom_call.1} parent=1 // pred_region
      %s39 = ssub.s32 16, 16
      %40 = vsyncadd [#allocation6], %s39
      %s42 = sshll.u32 [#allocation7], 4
      %s43 = int_to_ptr.vmem [resolvable:$true] %s42
      %45 = dma.hbm_to_vmem [thread:$0]  %s2, 16, %s43, [#allocation6]
    $region13: #{tpu_custom_call.1} parent=1 // pred_fallthru
      _
    // Predicated region
    $region14: #{tpu_custom_call.1} parent=1 // pred_check
      _
    $region15: #{tpu_custom_call.1} parent=1 // pred_check_branch
      %47 = sbr.rel (0) target = $region17
    $region16: #{tpu_custom_call.1} parent=1 // pred_region
      %s49 = ssub.s32 1024, 1024
      %50 = vsyncadd [#allocation9], %s49
      %s51 = sshll.u32 [#allocation8], 4
      %s52 = int_to_ptr.vmem [resolvable:$true] %s51
      %57 = dma.hbm_to_vmem [thread:$0]  %s3, 1024, %s52, [#allocation9], 64, 64, 4
    $region17: #{tpu_custom_call.1} parent=1 // pred_fallthru
      _
    // Predicated region
    $region18: #{tpu_custom_call.1} parent=1 // pred_check
      _
    $region19: #{tpu_custom_call.1} parent=1 // pred_check_branch
      %59 = sbr.rel (0) target = $region21
    $region20: #{tpu_custom_call.1} parent=1 // pred_region
      %s61 = ssub.s32 16, 16
      %62 = vsyncadd [#allocation9], %s61
      %s64 = sshll.u32 [#allocation10], 4
      %s65 = int_to_ptr.vmem [resolvable:$true] %s64
      %67 = dma.hbm_to_vmem [thread:$0]  %s4, 16, %s65, [#allocation9]
    $region21: #{tpu_custom_call.1} parent=1 // pred_fallthru
      _
    // Predicated region
    $region22: #{tpu_custom_call.1} parent=1 // pred_check
      _
    $region23: #{tpu_custom_call.1} parent=1 // pred_check_branch
      %69 = sbr.rel (0) target = $region25
    $region24: #{tpu_custom_call.1} parent=1 // pred_region
      %70 = dma.done [#allocation3], 128
    $region25: #{tpu_custom_call.1} parent=1 // pred_fallthru
      _
    // Predicated region
    $region26: #{tpu_custom_call.1} parent=1 // pred_check
      _
    $region27: #{tpu_custom_call.1} parent=1 // pred_check_branch
      %72 = sbr.rel (0) target = $region29
    $region28: #{tpu_custom_call.1} parent=1 // pred_region
      %73 = dma.done [#allocation6], 16
    $region29: #{tpu_custom_call.1} parent=1 // pred_fallthru
      _
    // Predicated region
    $region30: #{tpu_custom_call.1} parent=1 // pred_check
      _
    $region31: #{tpu_custom_call.1} parent=1 // pred_check_branch
      %75 = sbr.rel (0) target = $region33
    $region32: #{tpu_custom_call.1} parent=1 // pred_region
      %76 = dma.done [#allocation6], 16
    $region33: #{tpu_custom_call.1} parent=1 // pred_fallthru
      _
    // Predicated region
    $region34: #{tpu_custom_call.1} parent=1 // pred_check
      _
    $region35: #{tpu_custom_call.1} parent=1 // pred_check_branch
      %78 = sbr.rel (0) target = $region37
    $region36: #{tpu_custom_call.1} parent=1 // pred_region
      %79 = dma.done [#allocation9], 1024
    $region37: #{tpu_custom_call.1} parent=1 // pred_fallthru
      _
    // Predicated region
    $region38: #{tpu_custom_call.1} parent=1 // pred_check
      _
    $region39: #{tpu_custom_call.1} parent=1 // pred_check_branch
      %81 = sbr.rel (0) target = $region41
    $region40: #{tpu_custom_call.1} parent=1 // pred_region
      %82 = dma.done [#allocation9], 16
    $region41: #{tpu_custom_call.1} parent=1 // pred_fallthru
      _
    %v84 = vld [vmem:[#allocation2] sm:$0xf]
    %v85 = vld [vmem:[#allocation2 + $0x4] sm:$0xf]
    %v86 = vld [vmem:[#allocation5] sm:$0x1]
    %v87 = vld [vmem:[#allocation7] sm:$0x1]
    %v88 = vunpack.c.l.bf16 %v84
    %v89 = vunpack.c.l.bf16 %v85
    %90 = vadd.xlane.f32.xlu0 %v88
    %v91 = vpop.xlane.xlu0 %90
    %92 = vadd.xlane.f32.xlu0 %v89
    %v93 = vpop.xlane.xlu0 %92
    %v94 = vrcp.pop 128.0
    %v95 = vmul.f32 %v91, %v94
    %v96 = vmul.f32 %v93, %v94
    %v97 = vsub.f32 %v88, %v95
    %v98 = vsub.f32 %v89, %v96
    %v99 = vmul.f32 %v97, %v97
    %v100 = vmul.f32 %v98, %v98
    %101 = vadd.xlane.f32.xlu0 %v99
    %v102 = vpop.xlane.xlu0 %101
    %103 = vadd.xlane.f32.xlu0 %v100
    %v104 = vpop.xlane.xlu0 %103
    %v105 = vmul.f32 %v102, %v94
    %v106 = vmul.f32 %v104, %v94
    %v107 = vadd.f32 %v105, 1e-05
    %v108 = vadd.f32 %v106, 1e-05
    %v109 = vrsqrt.pop %v107
    %v110 = vrsqrt.pop %v108
    %v111 = vmul.f32 %v97, %v109
    %v112 = vmul.f32 %v98, %v110
    %v114 = vlaneseq
    %v115 = vshrl.u32 %v114, 7
    %v116 = vsub.s32 0, %v115
    %v117 = vrot.slane %v86, %v116
    %v119 = vmul.f32 %v111, %v117
    %v120 = vmul.f32 %v112, %v117
    %v122 = vlaneseq
    %v123 = vshrl.u32 %v122, 7
    %v124 = vsub.s32 0, %v123
    %v125 = vrot.slane %v87, %v124
    %v127 = vadd.f32 %v119, %v125
    %v128 = vadd.f32 %v120, %v125
    %v129 = vpack.c.bf16 %v128, %v127
    %v130 = vld [vmem:[#allocation8] sm:$0xf]
    %v131 = vld [vmem:[#allocation8 + $0x4] sm:$0xf]
    %v132 = vld [vmem:[#allocation8 + $0x8] sm:$0xf]
    %v133 = vld [vmem:[#allocation8 + $0xc] sm:$0xf]
    %v134 = vld [vmem:[#allocation8 + $0x10] sm:$0xf]
    %v135 = vld [vmem:[#allocation8 + $0x14] sm:$0xf]
    %v136 = vld [vmem:[#allocation8 + $0x18] sm:$0xf]
    %v137 = vld [vmem:[#allocation8 + $0x1c] sm:$0xf]
    %v138 = vld [vmem:[#allocation8 + $0x20] sm:$0xf]
    %v139 = vld [vmem:[#allocation8 + $0x24] sm:$0xf]
    %v140 = vld [vmem:[#allocation8 + $0x28] sm:$0xf]
    %v141 = vld [vmem:[#allocation8 + $0x2c] sm:$0xf]
    %v142 = vld [vmem:[#allocation8 + $0x30] sm:$0xf]
    %v143 = vld [vmem:[#allocation8 + $0x34] sm:$0xf]
    %v144 = vld [vmem:[#allocation8 + $0x38] sm:$0xf]
    %v145 = vld [vmem:[#allocation8 + $0x3c] sm:$0xf]
    %v146 = vld [vmem:[#allocation10] sm:$0x1]
    %v148 = vlaneseq
    %v149 = vshrl.u32 %v148, 7
    %v150 = vsub.s32 0, %v149
    %v151 = vrot.slane %v146, %v150
    %v169 = vunpack.c.l.b16 %v130
    %v170 = vunpack.c.l.b16 %v131
    %v171 = vunpack.c.l.b16 %v132
    %v172 = vunpack.c.l.b16 %v133
    %v173 = vunpack.c.l.b16 %v134
    %v174 = vunpack.c.l.b16 %v135
    %v175 = vunpack.c.l.b16 %v136
    %v176 = vunpack.c.l.b16 %v137
    %v177 = vunpack.c.l.b16 %v138
    %v178 = vunpack.c.l.b16 %v139
    %v179 = vunpack.c.l.b16 %v140
    %v180 = vunpack.c.l.b16 %v141
    %v181 = vunpack.c.l.b16 %v142
    %v182 = vunpack.c.l.b16 %v143
    %v183 = vunpack.c.l.b16 %v144
    %v184 = vunpack.c.l.b16 %v145
    %v185 = vpack.c.b16 %v170, %v169
    %v186 = vpack.c.b16 %v172, %v171
    %v187 = vpack.c.b16 %v174, %v173
    %v188 = vpack.c.b16 %v176, %v175
    %v189 = vpack.c.b16 %v178, %v177
    %v190 = vpack.c.b16 %v180, %v179
    %v191 = vpack.c.b16 %v182, %v181
    %v192 = vpack.c.b16 %v184, %v183
    %201 = vmatprep.subr.bf16.mxu0 0
    %202 = vmatpush1.bf16.msra.mxu0 %v185
    %203 = vmatprep.subr.bf16.mxu0 0
    %204 = vmatpush1.bf16.msra.mxu0 %v186
    %205 = vmatprep.subr.bf16.mxu0 0
    %206 = vmatpush1.bf16.msra.mxu0 %v187
    %207 = vmatprep.subr.bf16.mxu0 0
    %208 = vmatpush1.bf16.msra.mxu0 %v188
    %209 = vmatprep.subr.bf16.mxu0 0
    %210 = vmatpush1.bf16.msra.mxu0 %v189
    %211 = vmatprep.subr.bf16.mxu0 0
    %212 = vmatpush1.bf16.msra.mxu0 %v190
    %213 = vmatprep.subr.bf16.mxu0 0
    %214 = vmatpush1.bf16.msra.mxu0 %v191
    %215 = vmatprep.subr.bf16.mxu0 0
    %216 = vmatpush1.bf16.msra.mxu0 %v192
    %217 = vmatprep.subr.bf16.mxu0 0
    %218 = vmatpush1.bf16.msra.mxu0 0
    %219 = vmatprep.subr.bf16.mxu0 0
    %220 = vmatpush1.bf16.msra.mxu0 0
    %221 = vmatprep.subr.bf16.mxu0 0
    %222 = vmatpush1.bf16.msra.mxu0 0
    %223 = vmatprep.subr.bf16.mxu0 0
    %224 = vmatpush1.bf16.msra.mxu0 0
    %225 = vmatprep.subr.bf16.mxu0 0
    %226 = vmatpush1.bf16.msra.mxu0 0
    %227 = vmatprep.subr.bf16.mxu0 0
    %228 = vmatpush1.bf16.msra.mxu0 0
    %229 = vmatprep.subr.bf16.mxu0 0
    %230 = vmatpush1.bf16.msra.mxu0 0
    %231 = vmatprep.subr.bf16.mxu0 0
    %232 = vmatpush1.bf16.msra.mxu0 0
    %233 = vmatprep.mubr.bf16.mxu0 0
    %234 = vmatmul.mubr.bf16.gmra.mrb[0].mxu0 %v129
    %v235 = vpop.f32.mrb[0].mxu0
    %v236 = vadd.f32 %v151, %v235
    %v237 = vpop.f32.mrb[0].mxu0
    %v238 = vpop.f32.mrb[0].mxu0
    %v239 = vadd.f32 %v151, %v238
    %v240 = vpop.f32.mrb[0].mxu0
    %241 = vdwg.mxu0
    %242 = vst [vmem:[#allocation11] sm:$0xff] %v236
    %243 = vst [vmem:[#allocation11 + $0x8] sm:$0xff] %v239
    // Predicated region
    $region42: #{tpu_custom_call.1} parent=1 // pred_check
      _
    $region43: #{tpu_custom_call.1} parent=1 // pred_check_branch
      %245 = sbr.rel (0) target = $region45
    $region44: #{tpu_custom_call.1} parent=1 // pred_region
      %s247 = ssub.s32 256, 256
      %248 = vsyncadd [#allocation4], %s247
      %s249 = sshll.u32 [#allocation11], 4
      %s250 = int_to_ptr.vmem [resolvable:$true] %s249
      %255 = dma.vmem_to_hbm [thread:$0]  %s250, 256, %s5, [#allocation4], 128, 128, 8
    $region45: #{tpu_custom_call.1} parent=1 // pred_fallthru
      _
    // Predicated region
    $region46: #{tpu_custom_call.1} parent=1 // pred_check
      _
    $region47: #{tpu_custom_call.1} parent=1 // pred_check_branch
      %257 = sbr.rel (0) target = $region49
    $region48: #{tpu_custom_call.1} parent=1 // pred_region
      %258 = dma.done [#allocation4], 256
    $region49: #{tpu_custom_call.1} parent=1 // pred_fallthru
      _
    %259 = vsyncpa [#allocation3], 1
    %260 = vsyncpa [#allocation6], 1
    %261 = vsyncpa [#allocation9], 1
    %262 = vsyncpa [#allocation4], 1

</llo_original>
